<compile_context>
chip_gen: v5e
topology: v5e:2x2
jax: 0.10.0
libtpu: 0.0.40
codegen_flags: <defaults>
</compile_context>

<pallas_src>
import functools

import jax
import jax.numpy as jnp
from jax.experimental import pallas as pl
from jax.experimental.pallas import tpu as pltpu


def _srn_loss_kernel(labels_ref, word_ref, gsrm_ref, pred_ref, acc_ref,
                     *, n_rows, steps_per_part, block_rows):
    p = pl.program_id(0)
    step = pl.program_id(1)

    @pl.when(step == 0)
    def _():
        acc_ref[...] = jnp.zeros_like(acc_ref)

    tn, c = word_ref.shape

    # Row validity: (a) inside the static row count (the trailing block may read
    # unspecified memory past the array end), (b) label != 0 (ignore_index).
    tile = p * steps_per_part + step                    # un-clamped tile index
    row0 = tile * block_rows
    row_ids = row0 + jax.lax.broadcasted_iota(jnp.int32, (tn, 1), 0)
    labels = labels_ref[...]                            # (TN, 1) int32
    valid = jnp.logical_and(row_ids < n_rows, labels != 0)   # (TN, 1) bool

    # Boolean target mask, shared across the three streams (never a f32 one-hot).
    class_ids = jax.lax.broadcasted_iota(jnp.int32, (tn, c), 1)
    is_tgt = class_ids == labels                        # (TN, C) bool

    def masked_ce_sum(logits):
        x = logits.astype(jnp.float32)
        m = jnp.max(x, axis=-1, keepdims=True)
        lse = jnp.log(jnp.sum(jnp.exp(x - m), axis=-1, keepdims=True)) + m
        tgt = jnp.sum(jnp.where(is_tgt, x, 0.0), axis=-1, keepdims=True)
        # Select (not multiply): garbage rows beyond n_rows may contain Inf/NaN.
        return jnp.sum(jnp.where(valid, lse - tgt, 0.0))

    ws = masked_ce_sum(word_ref[...])
    gs = masked_ce_sum(gsrm_ref[...])
    vs = masked_ce_sum(pred_ref[...])
    cnt = jnp.sum(jnp.where(valid, 1.0, 0.0))

    # Pack the 4 running scalars into lanes 0..3 of one lane-dense accumulator block.
    lane = jax.lax.broadcasted_iota(jnp.int32, (1, 1, 128), 2)
    contrib = (jnp.where(lane == 0, ws, 0.0)
               + jnp.where(lane == 1, gs, 0.0)
               + jnp.where(lane == 2, vs, 0.0)
               + jnp.where(lane == 3, cnt, 0.0))
    acc_ref[...] += contrib


def _device_kind():
    try:
        return jax.devices()[0].device_kind.lower()
    except Exception:
        return ""


@functools.partial(jax.jit, static_argnames=("word_weight", "vsfd_weight", "gsrm_weight"))
def rec_srn_loss(predict, word_out, gsrm_out, label_tensor,
                 word_weight=1.0, vsfd_weight=2.0, gsrm_weight=0.15):
    C = predict.shape[-1]
    assert word_out.shape[-1] == C and gsrm_out.shape[-1] == C, \
        "all heads must share the class dim"

    pred2 = predict.reshape(-1, C)
    word2 = word_out.reshape(-1, C)
    gsrm2 = gsrm_out.reshape(-1, C)
    labels2 = label_tensor.reshape(-1, 1).astype(jnp.int32)
    N = labels2.shape[0]

    itemsize = max(pred2.dtype.itemsize, word2.dtype.itemsize, gsrm2.dtype.itemsize)
    sub = 8 if itemsize >= 4 else 16                    # sublane packing granularity

    kind = _device_kind()
    is_v7 = "v7" in kind

    # --- tile selection (no padding of the big tensors) ---
    # Per-row VMEM footprint: double-buffered 3 input streams + ~4 f32 intermediate slabs.
    bytes_per_row = C * (2 * 3 * itemsize + 4 * 4) + 2 * 4
    budget = (24 << 20) if is_v7 else (40 << 20)        # v7x has 64 MiB VMEM; v5e/v6e 128 MiB
    max_tn = 512 if is_v7 else 2048
    tn_cap = max(sub, (budget // bytes_per_row) // sub * sub)
    n_floor = max(sub, (N // sub) * sub)                # keep the tail block the standard partial case
    TN = max(sub, min(max_tn, tn_cap, n_floor))

    total_tiles = -(-N // TN)
    # Two-way partition only on v7x (2 TensorCores); single-TC chips keep P=1.
    P = 2 if (is_v7 and total_tiles >= 2) else 1
    steps = -(-total_tiles // P)

    def row_map(p, i):
        # Clamp so every block starts in-bounds; the kernel masks the duplicated /
        # out-of-range rows via the static row count.
        return (jnp.minimum(p * steps + i, total_tiles - 1), 0)

    vmem_need = 2 * (3 * TN * C * itemsize + TN * 4) + 4 * TN * C * 4 + 2 * 128 * 4
    vmem_ceiling = (40 << 20) if is_v7 else (96 << 20)
    vmem_limit = int(min(vmem_ceiling, max(int(1.5 * vmem_need), 32 << 20)))

    kernel = functools.partial(_srn_loss_kernel, n_rows=N,
                               steps_per_part=steps, block_rows=TN)

    acc = pl.pallas_call(
        kernel,
        out_shape=jax.ShapeDtypeStruct((P, 1, 128), jnp.float32),
        grid_spec=pltpu.PrefetchScalarGridSpec(
            num_scalar_prefetch=0,
            grid=(P, steps),
            in_specs=[
                pl.BlockSpec((TN, 1), row_map),          # labels
                pl.BlockSpec((TN, C), row_map),          # word_out logits
                pl.BlockSpec((TN, C), row_map),          # gsrm_out logits
                pl.BlockSpec((TN, C), row_map),          # predict logits
            ],
            out_specs=pl.BlockSpec((1, 1, 128), lambda p, i: (p, 0, 0)),
        ),
        compiler_params=pltpu.CompilerParams(
            dimension_semantics=("parallel", "arbitrary"),
            vmem_limit_bytes=vmem_limit,
        ),
        cost_estimate=pl.CostEstimate(
            flops=int(6 * 3 * N * C),
            transcendentals=int(3 * N * C),
            bytes_accessed=int(3 * N * C * itemsize + N * 4 + P * 128 * 4),
        ),
    )(labels2, word2, gsrm2, pred2)

    sums = jnp.sum(acc, axis=(0, 1))                     # (128,) partition partials -> total
    n_valid = sums[3]
    # NOTE: if every label is 0 (all ignored) this yields NaN, matching
    # torch.nn.CrossEntropyLoss(ignore_index=0) on an all-ignored batch.
    loss_word = sums[0] / n_valid
    loss_gsrm = sums[1] / n_valid
    loss_vsfd = sums[2] / n_valid
    loss = (word_weight * loss_word
            + gsrm_weight * loss_gsrm
            + vsfd_weight * loss_vsfd)
    return dict(loss=loss, loss_word=loss_word,
                loss_gsrm=loss_gsrm, loss_vsfd=loss_vsfd)


def _reference(predict, word_out, gsrm_out, label,
               word_weight=1.0, vsfd_weight=2.0, gsrm_weight=0.15):
    """Pure-JAX reference of torch.nn.CrossEntropyLoss(ignore_index=0)."""
    def ce(logits, labels):
        logits = logits.reshape(-1, logits.shape[-1]).astype(jnp.float32)
        labels = labels.reshape(-1)
        logp = jax.nn.log_softmax(logits, axis=-1)
        nll = -jnp.take_along_axis(logp, labels[:, None], axis=-1)[:, 0]
        mask = (labels != 0).astype(jnp.float32)
        return jnp.sum(nll * mask) / jnp.sum(mask)

    lw = ce(word_out, label)
    lg = ce(gsrm_out, label)
    lv = ce(predict, label)
    return (word_weight * lw + gsrm_weight * lg + vsfd_weight * lv, lw, lg, lv)


if __name__ == "__main__":
    # Case 1: aligned shapes (B*T multiple of 8, C multiple of 128).
    B, T, C = 2, 8, 128
    k1, k2, k3, k4 = jax.random.split(jax.random.PRNGKey(0), 4)
    predict = jax.random.normal(k1, (B, T, C), dtype=jnp.float32)
    word_out = jax.random.normal(k2, (B, T, C), dtype=jnp.float32)
    gsrm_out = jax.random.normal(k3, (B, T, C), dtype=jnp.float32)
    label = jax.random.randint(k4, (B, T), 0, C, dtype=jnp.int32)   # zeros = ignored

    out = rec_srn_loss(predict, word_out, gsrm_out, label)
    jax.block_until_ready(out)
    ref, rlw, rlg, rlv = _reference(predict, word_out, gsrm_out, label)
    assert jnp.allclose(out["loss"], ref, rtol=1e-5, atol=1e-5), (out["loss"], ref)
    assert jnp.allclose(out["loss_word"], rlw, rtol=1e-5, atol=1e-5), (out["loss_word"], rlw)

    # Case 2: unaligned small shapes (N=14 rows, C=100 classes) — partial row/lane tails.
    B2, T2, C2 = 2, 7, 100
    k5, k6, k7, k8 = jax.random.split(jax.random.PRNGKey(1), 4)
    predict2 = jax.random.normal(k5, (B2, T2, C2), dtype=jnp.float32)
    word_out2 = jax.random.normal(k6, (B2, T2, C2), dtype=jnp.float32)
    gsrm_out2 = jax.random.normal(k7, (B2, T2, C2), dtype=jnp.float32)
    label2 = jax.random.randint(k8, (B2, T2), 0, C2, dtype=jnp.int32)

    out2 = rec_srn_loss(predict2, word_out2, gsrm_out2, label2)
    jax.block_until_ready(out2)
    ref2, _, _, _ = _reference(predict2, word_out2, gsrm_out2, label2)
    assert jnp.allclose(out2["loss"], ref2, rtol=1e-5, atol=1e-5), (out2["loss"], ref2)

    # Case 3: enough rows to exercise multiple grid steps (and the clamp path on v7x).
    B3, T3, C3 = 4, 550, 100
    k9, k10, k11, k12 = jax.random.split(jax.random.PRNGKey(2), 4)
    predict3 = jax.random.normal(k9, (B3, T3, C3), dtype=jnp.float32)
    word_out3 = jax.random.normal(k10, (B3, T3, C3), dtype=jnp.float32)
    gsrm_out3 = jax.random.normal(k11, (B3, T3, C3), dtype=jnp.float32)
    label3 = jax.random.randint(k12, (B3, T3), 0, C3, dtype=jnp.int32)

    out3 = rec_srn_loss(predict3, word_out3, gsrm_out3, label3)
    jax.block_until_ready(out3)
    ref3, _, _, _ = _reference(predict3, word_out3, gsrm_out3, label3)
    assert jnp.allclose(out3["loss"], ref3, rtol=1e-4, atol=1e-5), (out3["loss"], ref3)

    print("KERNEL_OK")
</pallas_src>

<mosaic_0001>
module attributes {stable_mosaic.version = 11 : i64} {
  func.func @_srn_loss_kernel(%arg0: i32, %arg1: i32, %arg2: memref<16x1xi32, #tpu.memory_space<vmem>>, %arg3: memref<16x128xf32, #tpu.memory_space<vmem>>, %arg4: memref<16x128xf32, #tpu.memory_space<vmem>>, %arg5: memref<16x128xf32, #tpu.memory_space<vmem>>, %arg6: memref<1x1x128xf32, #tpu.memory_space<vmem>>) attributes {dimension_semantics = [#tpu.dimension_semantics<parallel>, #tpu.dimension_semantics<arbitrary>], iteration_bounds = array<i64: 1, 1>, scalar_prefetch = 0 : i64, scratch_operands = 0 : i64, tpu.core_type = #tpu.core_type<tc>, window_params = [{transform_indices = @transform_0, window_bounds = array<i64: 16, 1>}, {transform_indices = @transform_1, window_bounds = array<i64: 16, 128>}, {transform_indices = @transform_2, window_bounds = array<i64: 16, 128>}, {transform_indices = @transform_3, window_bounds = array<i64: 16, 128>}, {transform_indices = @transform_4, window_bounds = array<i64: 1, 1, 128>}]} {
    %c0_i32 = arith.constant 0 : i32
    %0 = arith.cmpi eq, %arg1, %c0_i32 : i32
    %1 = arith.extui %0 : i1 to i32
    %c0_i32_0 = arith.constant 0 : i32
    %2 = arith.cmpi ne, %1, %c0_i32_0 : i32
    scf.if %2 {
      %cst_42 = arith.constant 0.000000e+00 : f32
      %115 = vector.broadcast %cst_42 : f32 to vector<1x1x128xf32>
      %c0_43 = arith.constant 0 : index
      %c0_44 = arith.constant 0 : index
      %c0_45 = arith.constant 0 : index
      %116 = vector.load %arg6[%c0_43, %c0_44, %c0_45] : memref<1x1x128xf32, #tpu.memory_space<vmem>>, vector<1x1x128xf32>
      tpu.vector_store %arg6[%c0_43, %c0_44, %c0_45], %115 {strides = array<i32>} : memref<1x1x128xf32, #tpu.memory_space<vmem>>, vector<1x1x128xf32>,
    } else {
    }
    %c1_i32 = arith.constant 1 : i32
    %3 = arith.muli %arg0, %c1_i32 : i32
    %4 = arith.addi %3, %arg1 : i32
    %c16_i32 = arith.constant 16 : i32
    %5 = arith.muli %4, %c16_i32 : i32
    %6 = tpu.iota {dimensions = array<i32: 0>} : vector<16x1xi32>
    %7 = vector.broadcast %5 : i32 to vector<16x1xi32>
    %8 = arith.addi %7, %6 : vector<16x1xi32>
    %c0 = arith.constant 0 : index
    %c0_1 = arith.constant 0 : index
    %9 = vector.load %arg2[%c0, %c0_1] : memref<16x1xi32, #tpu.memory_space<vmem>>, vector<16x1xi32>
    %c16_i32_2 = arith.constant 16 : i32
    %10 = vector.broadcast %c16_i32_2 : i32 to vector<16x1xi32>
    %11 = arith.cmpi slt, %8, %10 : vector<16x1xi32>
    %c0_i32_3 = arith.constant 0 : i32
    %12 = vector.broadcast %c0_i32_3 : i32 to vector<16x1xi32>
    %13 = arith.cmpi ne, %9, %12 : vector<16x1xi32>
    %14 = arith.andi %11, %13 : vector<16x1xi1>
    %15 = tpu.iota {dimensions = array<i32: 1>} : vector<16x128xi32>
    %16 = vector.broadcast %9 : vector<16x1xi32> to vector<16x128xi32>
    %17 = arith.cmpi eq, %15, %16 : vector<16x128xi32>
    %c0_4 = arith.constant 0 : index
    %c0_5 = arith.constant 0 : index
    %18 = vector.load %arg3[%c0_4, %c0_5] : memref<16x128xf32, #tpu.memory_space<vmem>>, vector<16x128xf32>
    %cst = arith.constant dense<0xFF800000> : vector<16xf32>
    %19 = vector.multi_reduction <maximumf>, %18, %cst [1] : vector<16x128xf32> to vector<16xf32>
    %20 = vector.shape_cast %19 : vector<16xf32> to vector<16x1xf32>
    %21 = vector.broadcast %20 : vector<16x1xf32> to vector<16x128xf32>
    %22 = arith.subf %18, %21 : vector<16x128xf32>
    %23 = math.exp %22 : vector<16x128xf32>
    %cst_6 = arith.constant dense<0.000000e+00> : vector<16xf32>
    %24 = vector.multi_reduction <add>, %23, %cst_6 [1] : vector<16x128xf32> to vector<16xf32>
    %25 = vector.shape_cast %24 : vector<16xf32> to vector<16x1xf32>
    %26 = math.log %25 : vector<16x1xf32>
    %27 = arith.addf %26, %20 : vector<16x1xf32>
    %cst_7 = arith.constant 0.000000e+00 : f32
    %28 = vector.broadcast %cst_7 : f32 to vector<16x128xf32>
    %29 = arith.select %17, %18, %28 : vector<16x128xi1>, vector<16x128xf32>
    %cst_8 = arith.constant dense<0.000000e+00> : vector<16xf32>
    %30 = vector.multi_reduction <add>, %29, %cst_8 [1] : vector<16x128xf32> to vector<16xf32>
    %31 = vector.shape_cast %30 : vector<16xf32> to vector<16x1xf32>
    %32 = arith.subf %27, %31 : vector<16x1xf32>
    %cst_9 = arith.constant 0.000000e+00 : f32
    %33 = vector.broadcast %cst_9 : f32 to vector<16x1xf32>
    %34 = arith.select %14, %32, %33 : vector<16x1xi1>, vector<16x1xf32>
    %35 = vector.shape_cast %34 : vector<16x1xf32> to vector<1x16x1xf32>
    %cst_10 = arith.constant dense<0.000000e+00> : vector<1xf32>
    %36 = vector.multi_reduction <add>, %35, %cst_10 [1, 2] : vector<1x16x1xf32> to vector<1xf32>
    %37 = vector.shape_cast %36 : vector<1xf32> to vector<1x1x1xf32>
    %38 = vector.extract %37[0, 0, 0] : f32 from vector<1x1x1xf32>
    %c0_11 = arith.constant 0 : index
    %c0_12 = arith.constant 0 : index
    %39 = vector.load %arg4[%c0_11, %c0_12] : memref<16x128xf32, #tpu.memory_space<vmem>>, vector<16x128xf32>
    %cst_13 = arith.constant dense<0xFF800000> : vector<16xf32>
    %40 = vector.multi_reduction <maximumf>, %39, %cst_13 [1] : vector<16x128xf32> to vector<16xf32>
    %41 = vector.shape_cast %40 : vector<16xf32> to vector<16x1xf32>
    %42 = vector.broadcast %41 : vector<16x1xf32> to vector<16x128xf32>
    %43 = arith.subf %39, %42 : vector<16x128xf32>
    %44 = math.exp %43 : vector<16x128xf32>
    %cst_14 = arith.constant dense<0.000000e+00> : vector<16xf32>
    %45 = vector.multi_reduction <add>, %44, %cst_14 [1] : vector<16x128xf32> to vector<16xf32>
    %46 = vector.shape_cast %45 : vector<16xf32> to vector<16x1xf32>
    %47 = math.log %46 : vector<16x1xf32>
    %48 = arith.addf %47, %41 : vector<16x1xf32>
    %cst_15 = arith.constant 0.000000e+00 : f32
    %49 = vector.broadcast %cst_15 : f32 to vector<16x128xf32>
    %50 = arith.select %17, %39, %49 : vector<16x128xi1>, vector<16x128xf32>
    %cst_16 = arith.constant dense<0.000000e+00> : vector<16xf32>
    %51 = vector.multi_reduction <add>, %50, %cst_16 [1] : vector<16x128xf32> to vector<16xf32>
    %52 = vector.shape_cast %51 : vector<16xf32> to vector<16x1xf32>
    %53 = arith.subf %48, %52 : vector<16x1xf32>
    %cst_17 = arith.constant 0.000000e+00 : f32
    %54 = vector.broadcast %cst_17 : f32 to vector<16x1xf32>
    %55 = arith.select %14, %53, %54 : vector<16x1xi1>, vector<16x1xf32>
    %56 = vector.shape_cast %55 : vector<16x1xf32> to vector<1x16x1xf32>
    %cst_18 = arith.constant dense<0.000000e+00> : vector<1xf32>
    %57 = vector.multi_reduction <add>, %56, %cst_18 [1, 2] : vector<1x16x1xf32> to vector<1xf32>
    %58 = vector.shape_cast %57 : vector<1xf32> to vector<1x1x1xf32>
    %59 = vector.extract %58[0, 0, 0] : f32 from vector<1x1x1xf32>
    %c0_19 = arith.constant 0 : index
    %c0_20 = arith.constant 0 : index
    %60 = vector.load %arg5[%c0_19, %c0_20] : memref<16x128xf32, #tpu.memory_space<vmem>>, vector<16x128xf32>
    %cst_21 = arith.constant dense<0xFF800000> : vector<16xf32>
    %61 = vector.multi_reduction <maximumf>, %60, %cst_21 [1] : vector<16x128xf32> to vector<16xf32>
    %62 = vector.shape_cast %61 : vector<16xf32> to vector<16x1xf32>
    %63 = vector.broadcast %62 : vector<16x1xf32> to vector<16x128xf32>
    %64 = arith.subf %60, %63 : vector<16x128xf32>
    %65 = math.exp %64 : vector<16x128xf32>
    %cst_22 = arith.constant dense<0.000000e+00> : vector<16xf32>
    %66 = vector.multi_reduction <add>, %65, %cst_22 [1] : vector<16x128xf32> to vector<16xf32>
    %67 = vector.shape_cast %66 : vector<16xf32> to vector<16x1xf32>
    %68 = math.log %67 : vector<16x1xf32>
    %69 = arith.addf %68, %62 : vector<16x1xf32>
    %cst_23 = arith.constant 0.000000e+00 : f32
    %70 = vector.broadcast %cst_23 : f32 to vector<16x128xf32>
    %71 = arith.select %17, %60, %70 : vector<16x128xi1>, vector<16x128xf32>
    %cst_24 = arith.constant dense<0.000000e+00> : vector<16xf32>
    %72 = vector.multi_reduction <add>, %71, %cst_24 [1] : vector<16x128xf32> to vector<16xf32>
    %73 = vector.shape_cast %72 : vector<16xf32> to vector<16x1xf32>
    %74 = arith.subf %69, %73 : vector<16x1xf32>
    %cst_25 = arith.constant 0.000000e+00 : f32
    %75 = vector.broadcast %cst_25 : f32 to vector<16x1xf32>
    %76 = arith.select %14, %74, %75 : vector<16x1xi1>, vector<16x1xf32>
    %77 = vector.shape_cast %76 : vector<16x1xf32> to vector<1x16x1xf32>
    %cst_26 = arith.constant dense<0.000000e+00> : vector<1xf32>
    %78 = vector.multi_reduction <add>, %77, %cst_26 [1, 2] : vector<1x16x1xf32> to vector<1xf32>
    %79 = vector.shape_cast %78 : vector<1xf32> to vector<1x1x1xf32>
    %80 = vector.extract %79[0, 0, 0] : f32 from vector<1x1x1xf32>
    %cst_27 = arith.constant 1.000000e+00 : f32
    %cst_28 = arith.constant 0.000000e+00 : f32
    %81 = vector.broadcast %cst_27 : f32 to vector<16x1xf32>
    %82 = vector.broadcast %cst_28 : f32 to vector<16x1xf32>
    %83 = arith.select %14, %81, %82 : vector<16x1xi1>, vector<16x1xf32>
    %84 = vector.shape_cast %83 : vector<16x1xf32> to vector<1x16x1xf32>
    %cst_29 = arith.constant dense<0.000000e+00> : vector<1xf32>
    %85 = vector.multi_reduction <add>, %84, %cst_29 [1, 2] : vector<1x16x1xf32> to vector<1xf32>
    %86 = vector.shape_cast %85 : vector<1xf32> to vector<1x1x1xf32>
    %87 = vector.extract %86[0, 0, 0] : f32 from vector<1x1x1xf32>
    %88 = tpu.iota {dimensions = array<i32: 2>} : vector<1x1x128xi32>
    %c0_i32_30 = arith.constant 0 : i32
    %89 = vector.broadcast %c0_i32_30 : i32 to vector<1x1x128xi32>
    %90 = arith.cmpi eq, %88, %89 : vector<1x1x128xi32>
    %cst_31 = arith.constant 0.000000e+00 : f32
    %91 = vector.broadcast %38 : f32 to vector<1x1x128xf32>
    %92 = vector.broadcast %cst_31 : f32 to vector<1x1x128xf32>
    %93 = arith.select %90, %91, %92 : vector<1x1x128xi1>, vector<1x1x128xf32>
    %c1_i32_32 = arith.constant 1 : i32
    %94 = vector.broadcast %c1_i32_32 : i32 to vector<1x1x128xi32>
    %95 = arith.cmpi eq, %88, %94 : vector<1x1x128xi32>
    %cst_33 = arith.constant 0.000000e+00 : f32
    %96 = vector.broadcast %59 : f32 to vector<1x1x128xf32>
    %97 = vector.broadcast %cst_33 : f32 to vector<1x1x128xf32>
    %98 = arith.select %95, %96, %97 : vector<1x1x128xi1>, vector<1x1x128xf32>
    %99 = arith.addf %93, %98 : vector<1x1x128xf32>
    %c2_i32 = arith.constant 2 : i32
    %100 = vector.broadcast %c2_i32 : i32 to vector<1x1x128xi32>
    %101 = arith.cmpi eq, %88, %100 : vector<1x1x128xi32>
    %cst_34 = arith.constant 0.000000e+00 : f32
    %102 = vector.broadcast %80 : f32 to vector<1x1x128xf32>
    %103 = vector.broadcast %cst_34 : f32 to vector<1x1x128xf32>
    %104 = arith.select %101, %102, %103 : vector<1x1x128xi1>, vector<1x1x128xf32>
    %105 = arith.addf %99, %104 : vector<1x1x128xf32>
    %c3_i32 = arith.constant 3 : i32
    %106 = vector.broadcast %c3_i32 : i32 to vector<1x1x128xi32>
    %107 = arith.cmpi eq, %88, %106 : vector<1x1x128xi32>
    %cst_35 = arith.constant 0.000000e+00 : f32
    %108 = vector.broadcast %87 : f32 to vector<1x1x128xf32>
    %109 = vector.broadcast %cst_35 : f32 to vector<1x1x128xf32>
    %110 = arith.select %107, %108, %109 : vector<1x1x128xi1>, vector<1x1x128xf32>
    %111 = arith.addf %105, %110 : vector<1x1x128xf32>
    %c0_36 = arith.constant 0 : index
    %c0_37 = arith.constant 0 : index
    %c0_38 = arith.constant 0 : index
    %112 = vector.load %arg6[%c0_36, %c0_37, %c0_38] : memref<1x1x128xf32, #tpu.memory_space<vmem>>, vector<1x1x128xf32>
    %113 = arith.addf %112, %111 : vector<1x1x128xf32>
    %c0_39 = arith.constant 0 : index
    %c0_40 = arith.constant 0 : index
    %c0_41 = arith.constant 0 : index
    %114 = vector.load %arg6[%c0_39, %c0_40, %c0_41] : memref<1x1x128xf32, #tpu.memory_space<vmem>>, vector<1x1x128xf32>
    tpu.vector_store %arg6[%c0_39, %c0_40, %c0_41], %113 {strides = array<i32>} : memref<1x1x128xf32, #tpu.memory_space<vmem>>, vector<1x1x128xf32>,
    return
  }
  func.func @transform_0(%arg0: i32, %arg1: i32) -> (i32, i32) {
    %c1_i32 = arith.constant 1 : i32
    %0 = arith.muli %arg0, %c1_i32 : i32
    %1 = arith.addi %0, %arg1 : i32
    %c0_i32 = arith.constant 0 : i32
    %2 = arith.minsi %1, %c0_i32 : i32
    %c0_i32_0 = arith.constant 0 : i32
    %c0_i32_1 = arith.constant 0 : i32
    return %2, %c0_i32_0 : i32, i32
  }
  func.func @transform_1(%arg0: i32, %arg1: i32) -> (i32, i32) {
    %c1_i32 = arith.constant 1 : i32
    %0 = arith.muli %arg0, %c1_i32 : i32
    %1 = arith.addi %0, %arg1 : i32
    %c0_i32 = arith.constant 0 : i32
    %2 = arith.minsi %1, %c0_i32 : i32
    %c0_i32_0 = arith.constant 0 : i32
    %c0_i32_1 = arith.constant 0 : i32
    return %2, %c0_i32_0 : i32, i32
  }
  func.func @transform_2(%arg0: i32, %arg1: i32) -> (i32, i32) {
    %c1_i32 = arith.constant 1 : i32
    %0 = arith.muli %arg0, %c1_i32 : i32
    %1 = arith.addi %0, %arg1 : i32
    %c0_i32 = arith.constant 0 : i32
    %2 = arith.minsi %1, %c0_i32 : i32
    %c0_i32_0 = arith.constant 0 : i32
    %c0_i32_1 = arith.constant 0 : i32
    return %2, %c0_i32_0 : i32, i32
  }
  func.func @transform_3(%arg0: i32, %arg1: i32) -> (i32, i32) {
    %c1_i32 = arith.constant 1 : i32
    %0 = arith.muli %arg0, %c1_i32 : i32
    %1 = arith.addi %0, %arg1 : i32
    %c0_i32 = arith.constant 0 : i32
    %2 = arith.minsi %1, %c0_i32 : i32
    %c0_i32_0 = arith.constant 0 : i32
    %c0_i32_1 = arith.constant 0 : i32
    return %2, %c0_i32_0 : i32, i32
  }
  func.func @transform_4(%arg0: i32, %arg1: i32) -> (i32, i32, i32) {
    %c0_i32 = arith.constant 0 : i32
    %c0_i32_0 = arith.constant 0 : i32
    %c0_i32_1 = arith.constant 0 : i32
    return %arg0, %c0_i32, %c0_i32_0 : i32, i32, i32
  }
}

</mosaic_0001>

<llo_original>
// kernel: rec_srn_loss.1
$region0: #{rec_srn_loss.1}
  #allocation0 [shape = 'u32[]', space=smem, size = 0x4, offset = 0x4, fixed_abs, tag = 'smem constant byte address 0x4 - core index']
  #allocation1 [shape = 'u32[72,128]{1,0:T(1,128)}', space=vmem, size = 0x9000, scoped, tag = 'internal scratch']
  %s0 = inlined_call_operand.vmem [shape: s32[16,1], index: 0, kind: input, shape index: {}]
  %s1 = inlined_call_operand.vmem [shape: f32[16,128], index: 1, kind: input, shape index: {}]
  %s2 = inlined_call_operand.hbm [shape: f32[16,128], index: 2, kind: input, shape index: {}]
  %s3 = inlined_call_operand.hbm [shape: f32[16,128], index: 3, kind: input, shape index: {}]
  %s4 = inlined_call_operand.vmem [shape: f32[1,1,128], index: 4, kind: output, shape index: {}]
  %s5 = sld [smem:[#allocation0]]
  $region38: #{rec_srn_loss.1} parent=0
    _
  %s7 = ssub.s32 1, %s5
  %s8 = scalar_select 0, %s7, %s5
  $region1: #{rec_srn_loss.1} parent=0
    #allocation2 [shape = 'u8[8192]{0}', space=vmem, size = 0x2000, scoped, tag = 'input window, operand 2, single buffered']
    #allocation3 [shape = 's32[1]{0}', space=sflag, size = 0x4, scoped, tag = 'scoped memory for rec_srn_loss.1']
    #allocation4 [shape = 'u8[8192]{0}', space=vmem, size = 0x2000, scoped, tag = 'input window, operand 3, single buffered']
    #allocation5 [shape = 's32[1]{0}', space=sflag, size = 0x4, scoped, tag = 'scoped memory for rec_srn_loss.1']
    %9 = vsyncpa [#allocation3], 0
    %10 = vsyncpa [#allocation5], 0
    // Predicated region
    $region2: #{rec_srn_loss.1} parent=1 // pred_check
      _
    $region3: #{rec_srn_loss.1} parent=1 // pred_check_branch
      %12 = sbr.rel (0) target = $region5
    $region4: #{rec_srn_loss.1} parent=1 // pred_region
      %s13 = sadd.s32 0, 0
      %p14 = scmp.lt.s32.totalorder %s13, 0
      %s15 = scalar_select %p14, %s13, 0
      %s16 = smul.u32 2, %s15
      %p17 = scmp.lt.s32.totalorder %s16, 1
      %s18 = scalar_select %p17, %s16, 1
      %s19 = smul.addr %s18, 8
      %s20 = scalar_lea.vmem %s0, %s19
      %s21 = sadd.s32 0, 0
      %p22 = scmp.lt.s32.totalorder %s21, 0
      %s23 = scalar_select %p22, %s21, 0
      %s24 = smul.u32 2, %s23
    $region5: #{rec_srn_loss.1} parent=1 // pred_fallthru
      _
    // Predicated region
    $region6: #{rec_srn_loss.1} parent=1 // pred_check
      _
    $region7: #{rec_srn_loss.1} parent=1 // pred_check_branch
      %26 = sbr.rel (0) target = $region9
    $region8: #{rec_srn_loss.1} parent=1 // pred_region
      %s27 = sadd.s32 0, 0
      %p28 = scmp.lt.s32.totalorder %s27, 0
      %s29 = scalar_select %p28, %s27, 0
      %s30 = smul.u32 2, %s29
      %p31 = scmp.lt.s32.totalorder %s30, 1
      %s32 = scalar_select %p31, %s30, 1
      %s33 = smul.addr %s32, 8
      %s34 = scalar_lea.vmem %s1, %s33
      %s35 = sadd.s32 0, 0
      %p36 = scmp.lt.s32.totalorder %s35, 0
      %s37 = scalar_select %p36, %s35, 0
      %s38 = smul.u32 2, %s37
    $region9: #{rec_srn_loss.1} parent=1 // pred_fallthru
      _
    // Predicated region
    $region10: #{rec_srn_loss.1} parent=1 // pred_check
      _
    $region11: #{rec_srn_loss.1} parent=1 // pred_check_branch
      %40 = sbr.rel (0) target = $region13
    $region12: #{rec_srn_loss.1} parent=1 // pred_region
      %s41 = sadd.s32 0, 0
      %p42 = scmp.lt.s32.totalorder %s41, 0
      %s43 = scalar_select %p42, %s41, 0
      %s44 = smul.u32 2, %s43
      %46 = vsyncadd [#allocation3], 0
      %s47 = smul.addr %s44, 8
      %s48 = scalar_lea.hbm %s2, %s47
      %s49 = sshll.u32 %s48, 4
      %s50 = int_to_ptr.hbm [resolvable:$true] %s49
      %s51 = sshll.u32 [#allocation2], 4
      %s52 = int_to_ptr.vmem [resolvable:$true] %s51
      %57 = dma.hbm_to_vmem [thread:$0]  %s50, 256, %s52, [#allocation3], 128, 128, 8
    $region13: #{rec_srn_loss.1} parent=1 // pred_fallthru
      _
    // Predicated region
    $region14: #{rec_srn_loss.1} parent=1 // pred_check
      _
    $region15: #{rec_srn_loss.1} parent=1 // pred_check_branch
      %59 = sbr.rel (0) target = $region17
    $region16: #{rec_srn_loss.1} parent=1 // pred_region
      %s60 = sadd.s32 0, 0
      %p61 = scmp.lt.s32.totalorder %s60, 0
      %s62 = scalar_select %p61, %s60, 0
      %s63 = smul.u32 2, %s62
      %65 = vsyncadd [#allocation5], 0
      %s66 = smul.addr %s63, 8
      %s67 = scalar_lea.hbm %s3, %s66
      %s68 = sshll.u32 %s67, 4
      %s69 = int_to_ptr.hbm [resolvable:$true] %s68
      %s70 = sshll.u32 [#allocation4], 4
      %s71 = int_to_ptr.vmem [resolvable:$true] %s70
      %76 = dma.hbm_to_vmem [thread:$0]  %s69, 256, %s71, [#allocation5], 128, 128, 8
    $region17: #{rec_srn_loss.1} parent=1 // pred_fallthru
      _
    // Predicated region
    $region18: #{rec_srn_loss.1} parent=1 // pred_check
      _
    $region19: #{rec_srn_loss.1} parent=1 // pred_check_branch
      %78 = sbr.rel (0) target = $region21
    $region20: #{rec_srn_loss.1} parent=1 // pred_region
      %80 = dma.done [#allocation3], 256
    $region21: #{rec_srn_loss.1} parent=1 // pred_fallthru
      _
    // Predicated region
    $region22: #{rec_srn_loss.1} parent=1 // pred_check
      _
    $region23: #{rec_srn_loss.1} parent=1 // pred_check_branch
      %82 = sbr.rel (0) target = $region25
    $region24: #{rec_srn_loss.1} parent=1 // pred_region
      %84 = dma.done [#allocation5], 256
    $region25: #{rec_srn_loss.1} parent=1 // pred_fallthru
      _
    %s85 = sadd.s32 0, 0
    %p86 = scmp.lt.s32.totalorder %s85, 0
    %s87 = scalar_select %p86, %s85, 0
    %s88 = smul.u32 2, %s87
    %p89 = scmp.lt.s32.totalorder %s88, 1
    %s90 = scalar_select %p89, %s88, 1
    %s91 = smul.addr %s90, 8
    %s92 = scalar_lea.vmem %s0, %s91
    %s93 = sadd.s32 0, 0
    %p94 = scmp.lt.s32.totalorder %s93, 0
    %s95 = scalar_select %p94, %s93, 0
    %s96 = smul.u32 2, %s95
    %p97 = scmp.lt.s32.totalorder %s96, 1
    %s98 = scalar_select %p97, %s96, 1
    %s99 = smul.addr %s98, 8
    %s100 = scalar_lea.vmem %s1, %s99
    %s101 = sadd.s32 0, 0
    %p102 = scmp.lt.s32.totalorder %s101, 0
    %s103 = scalar_select %p102, %s101, 0
    %s104 = smul.u32 2, %s103
    %p105 = scmp.lt.s32.totalorder %s104, 1
    %s106 = scalar_select %p105, %s104, 1
    %s107 = smul.addr %s106, 8
    %s108 = scalar_lea.vmem %s0, %s107
    %s109 = sadd.s32 0, 0
    %p110 = scmp.lt.s32.totalorder %s109, 0
    %s111 = scalar_select %p110, %s109, 0
    %s112 = smul.u32 2, %s111
    %s113 = sadd.s32 0, 0
    %p114 = scmp.lt.s32.totalorder %s113, 0
    %s115 = scalar_select %p114, %s113, 0
    %s116 = smul.u32 2, %s115
    %p117 = scmp.lt.s32.totalorder %s116, 1
    %s118 = scalar_select %p117, %s116, 1
    %s119 = smul.addr %s118, 8
    %s120 = scalar_lea.vmem %s1, %s119
    %s121 = sadd.s32 0, 0
    %p122 = scmp.lt.s32.totalorder %s121, 0
    %s123 = scalar_select %p122, %s121, 0
    %s124 = smul.u32 2, %s123
    %s125 = sadd.s32 0, 0
    %p126 = scmp.lt.s32.totalorder %s125, 0
    %s127 = scalar_select %p126, %s125, 0
    %s128 = smul.u32 2, %s127
    %s129 = sadd.s32 0, 0
    %p130 = scmp.lt.s32.totalorder %s129, 0
    %s131 = scalar_select %p130, %s129, 0
    %s132 = smul.u32 2, %s131
    %p133 = scmp.eq.s32.totalorder 0, 0
    // Predicated region
    $region26: #{rec_srn_loss.1} parent=1 // pred_check
      %p134 = pneg %p133
    $region27: #{rec_srn_loss.1} parent=1 // pred_check_branch
      %136 = sbr.rel (%p134) target = $region29
    $region28: #{rec_srn_loss.1} parent=1 // pred_region
      %137 = vst [vmem:[%s4] sm:$0x1] 0.0
    $region29: #{rec_srn_loss.1} parent=1 // pred_fallthru
      _
    %s138 = sadd.s32 0, 0
    %s139 = smul.u32 %s138, 16
    %v140 = vlaneseq
    %v141 = vshrl.u32 %v140, 7
    %v142 = vadd.s32 %v141, 8
    %v143 = vstv %s139
    %v144 = vadd.s32 %v143, %v141
    %v145 = vadd.s32 %v143, %v142
    %v146 = vld [vmem:[%s108] sm:$0xff]
    %v147 = vld [vmem:[%s108 + $0x8] sm:$0xff]
    %vm148 = vcmp.lt.s32.totalorder %v144, 16
    %vm149 = vcmp.lt.s32.totalorder %v145, 16
    %vm150 = vcmp.ne.s32.totalorder %v146, 0
    %vm151 = vcmp.ne.s32.totalorder %v147, 0
    %vm152 = vmand %vm148, %vm150
    %vm153 = vmand %vm149, %vm151
    %v154 = vlaneseq
    %v155 = vand.u32 %v154, 127
    %156 = vset.pattern.permute.xlu0 0
    %157 = vperm.xlu0 %156, %v146
    %v158 = vpop.permute.xlu0 %157
    %159 = vset.pattern.permute.xlu0 0
    %160 = vperm.xlu0 %159, %v147
    %v161 = vpop.permute.xlu0 %160
    %vm162 = vcmp.eq.s32.totalorder %v155, %v158
    %vm163 = vcmp.eq.s32.totalorder %v155, %v161
    %v164 = vld [vmem:[%s120] sm:$0xff]
    %v165 = vld [vmem:[%s120 + $0x8] sm:$0xff]
    %166 = vmax.xlane.f32.xlu0 %v164
    %v167 = vpop.xlane.xlu0 %166
    %168 = vmax.xlane.f32.xlu0 %v165
    %v169 = vpop.xlane.xlu0 %168
    %v170 = vsub.f32 %v164, %v167
    %v171 = vsub.f32 %v165, %v169
    %v172 = vmul.f32 %v170, 1.442695
    %v173 = vpow.pop %v172
    %v174 = vmul.f32 %v171, 1.442695
    %v175 = vpow.pop %v174
    %176 = vadd.xlane.f32.xlu0 %v173
    %v177 = vpop.xlane.xlu0 %176
    %178 = vadd.xlane.f32.xlu0 %v175
    %v179 = vpop.xlane.xlu0 %178
    %v180 = vlog2.pop %v177
    %v181 = vmul.f32 %v180, 0.6931472
    %v182 = vlog2.pop %v179
    %v183 = vmul.f32 %v182, 0.6931472
    %v184 = vadd.f32 %v181, %v167
    %v185 = vadd.f32 %v183, %v169
    %v186 = vsel %vm162, %v164, 0.0
    %v187 = vsel %vm163, %v165, 0.0
    %188 = vadd.xlane.f32.xlu0 %v186
    %v189 = vpop.xlane.xlu0 %188
    %190 = vadd.xlane.f32.xlu0 %v187
    %v191 = vpop.xlane.xlu0 %190
    %v192 = vsub.f32 %v184, %v189
    %v193 = vsub.f32 %v185, %v191
    %v194 = vsel %vm152, %v192, 0.0
    %v195 = vsel %vm153, %v193, 0.0
    %vm196 = vcmask 7168
    %v197 = vsel %vm196, %v194, 0.0
    %v198 = vsel %vm196, %v195, 0.0
    %v199 = vadd.f32 %v197, %v198
    %200 = vadd.xlane.f32.xlu0 %v199
    %v201 = vpop.xlane.xlu0 %200
    %v202 = vrot.slane %v201, 4
    %v203 = vadd.f32 %v201, %v202
    %v204 = vrot.slane %v203, 2
    %v205 = vadd.f32 %v203, %v204
    %v206 = vrot.slane %v205, 1
    %v207 = vadd.f32 %v205, %v206
    %s208 = vtos %v207
    %v209 = vld [vmem:[#allocation2] sm:$0xff]
    %v210 = vld [vmem:[#allocation2 + $0x8] sm:$0xff]
    %211 = vmax.xlane.f32.xlu0 %v209
    %v212 = vpop.xlane.xlu0 %211
    %213 = vmax.xlane.f32.xlu0 %v210
    %v214 = vpop.xlane.xlu0 %213
    %v215 = vsub.f32 %v209, %v212
    %v216 = vsub.f32 %v210, %v214
    %v217 = vmul.f32 %v215, 1.442695
    %v218 = vpow.pop %v217
    %v219 = vmul.f32 %v216, 1.442695
    %v220 = vpow.pop %v219
    %221 = vadd.xlane.f32.xlu0 %v218
    %v222 = vpop.xlane.xlu0 %221
    %223 = vadd.xlane.f32.xlu0 %v220
    %v224 = vpop.xlane.xlu0 %223
    %v225 = vlog2.pop %v222
    %v226 = vmul.f32 %v225, 0.6931472
    %v227 = vlog2.pop %v224
    %v228 = vmul.f32 %v227, 0.6931472
    %v229 = vadd.f32 %v226, %v212
    %v230 = vadd.f32 %v228, %v214
    %v231 = vsel %vm162, %v209, 0.0
    %v232 = vsel %vm163, %v210, 0.0
    %233 = vadd.xlane.f32.xlu0 %v231
    %v234 = vpop.xlane.xlu0 %233
    %235 = vadd.xlane.f32.xlu0 %v232
    %v236 = vpop.xlane.xlu0 %235
    %v237 = vsub.f32 %v229, %v234
    %v238 = vsub.f32 %v230, %v236
    %v239 = vsel %vm152, %v237, 0.0
    %v240 = vsel %vm153, %v238, 0.0
    %v241 = vsel %vm196, %v239, 0.0
    %v242 = vsel %vm196, %v240, 0.0
    %v243 = vadd.f32 %v241, %v242
    %244 = vadd.xlane.f32.xlu0 %v243
    %v245 = vpop.xlane.xlu0 %244
    %v246 = vrot.slane %v245, 4
    %v247 = vadd.f32 %v245, %v246
    %v248 = vrot.slane %v247, 2
    %v249 = vadd.f32 %v247, %v248
    %v250 = vrot.slane %v249, 1
    %v251 = vadd.f32 %v249, %v250
    %s252 = vtos %v251
    %v253 = vld [vmem:[#allocation4] sm:$0xff]
    %v254 = vld [vmem:[#allocation4 + $0x8] sm:$0xff]
    %255 = vmax.xlane.f32.xlu0 %v253
    %v256 = vpop.xlane.xlu0 %255
    %257 = vmax.xlane.f32.xlu0 %v254
    %v258 = vpop.xlane.xlu0 %257
    %v259 = vsub.f32 %v253, %v256
    %v260 = vsub.f32 %v254, %v258
    %v261 = vmul.f32 %v259, 1.442695
    %v262 = vpow.pop %v261
    %v263 = vmul.f32 %v260, 1.442695
    %v264 = vpow.pop %v263
    %265 = vadd.xlane.f32.xlu0 %v262
    %v266 = vpop.xlane.xlu0 %265
    %267 = vadd.xlane.f32.xlu0 %v264
    %v268 = vpop.xlane.xlu0 %267
    %v269 = vlog2.pop %v266
    %v270 = vmul.f32 %v269, 0.6931472
    %v271 = vlog2.pop %v268
    %v272 = vmul.f32 %v271, 0.6931472
    %v273 = vadd.f32 %v270, %v256
    %v274 = vadd.f32 %v272, %v258
    %v275 = vsel %vm162, %v253, 0.0
    %v276 = vsel %vm163, %v254, 0.0
    %277 = vadd.xlane.f32.xlu0 %v275
    %v278 = vpop.xlane.xlu0 %277
    %279 = vadd.xlane.f32.xlu0 %v276
    %v280 = vpop.xlane.xlu0 %279
    %v281 = vsub.f32 %v273, %v278
    %v282 = vsub.f32 %v274, %v280
    %v283 = vsel %vm152, %v281, 0.0
    %v284 = vsel %vm153, %v282, 0.0
    %v285 = vsel %vm196, %v283, 0.0
    %v286 = vsel %vm196, %v284, 0.0
    %v287 = vadd.f32 %v285, %v286
    %288 = vadd.xlane.f32.xlu0 %v287
    %v289 = vpop.xlane.xlu0 %288
    %v290 = vrot.slane %v289, 4
    %v291 = vadd.f32 %v289, %v290
    %v292 = vrot.slane %v291, 2
    %v293 = vadd.f32 %v291, %v292
    %v294 = vrot.slane %v293, 1
    %v295 = vadd.f32 %v293, %v294
    %s296 = vtos %v295
    %v297 = vsel %vm152, 1.0, 0.0
    %v298 = vsel %vm153, 1.0, 0.0
    %v299 = vsel %vm196, %v297, 0.0
    %v300 = vsel %vm196, %v298, 0.0
    %v301 = vadd.f32 %v299, %v300
    %302 = vadd.xlane.f32.xlu0 %v301
    %v303 = vpop.xlane.xlu0 %302
    %v304 = vrot.slane %v303, 4
    %v305 = vadd.f32 %v303, %v304
    %v306 = vrot.slane %v305, 2
    %v307 = vadd.f32 %v305, %v306
    %v308 = vrot.slane %v307, 1
    %v309 = vadd.f32 %v307, %v308
    %s310 = vtos %v309
    %vm311 = vcmp.eq.s32.totalorder %v155, 0
    %v312 = vstv %s208
    %v313 = vsel %vm311, %v312, 0.0
    %vm314 = vcmp.eq.s32.totalorder %v155, 1
    %v315 = vstv %s252
    %v316 = vsel %vm314, %v315, 0.0
    %v317 = vadd.f32 %v313, %v316
    %vm318 = vcmp.eq.s32.totalorder %v155, 2
    %v319 = vstv %s296
    %v320 = vsel %vm318, %v319, 0.0
    %v321 = vadd.f32 %v317, %v320
    %vm322 = vcmp.eq.s32.totalorder %v155, 3
    %v323 = vstv %s310
    %v324 = vsel %vm322, %v323, 0.0
    %v325 = vadd.f32 %v321, %v324
    %v326 = vld [vmem:[%s4] sm:$0x1]
    %v327 = vadd.f32 %v326, %v325
    %328 = vst [vmem:[%s4] sm:$0x1] %v327
    // Predicated region
    $region30: #{rec_srn_loss.1} parent=1 // pred_check
      _
    $region31: #{rec_srn_loss.1} parent=1 // pred_check_branch
      %330 = sbr.rel (0) target = $region33
    $region32: #{rec_srn_loss.1} parent=1 // pred_region
      _
    $region33: #{rec_srn_loss.1} parent=1 // pred_fallthru
      _
    // Predicated region
    $region34: #{rec_srn_loss.1} parent=1 // pred_check
      _
    $region35: #{rec_srn_loss.1} parent=1 // pred_check_branch
      %332 = sbr.rel (0) target = $region37
    $region36: #{rec_srn_loss.1} parent=1 // pred_region
      _
    $region37: #{rec_srn_loss.1} parent=1 // pred_fallthru
      _
    %333 = vsyncpa [#allocation3], 1
    %334 = vsyncpa [#allocation5], 1

</llo_original>
